<compile_context>
chip_gen: v7x
topology: tpu7x:2x2x1
jax: 0.10.0
libtpu: 0.0.40
codegen_flags: <defaults>
</compile_context>

<pallas_src>
import functools

import jax
import jax.numpy as jnp
from jax.experimental import pallas as pl
from jax.experimental.pallas import tpu as pltpu


def _round_up(x, m):
    return (x + m - 1) // m * m


def _vmem_capacity_bytes():
    """Trace-time VMEM capacity; fall back to the smallest (v7x, 64 MiB)."""
    try:
        return int(pltpu.get_tpu_info().vmem_capacity_bytes)
    except Exception:  # CPU tracing / interpret / old runtime
        return 64 * 1024 * 1024


# ---------------------------------------------------------------------------
# Kernels
# ---------------------------------------------------------------------------
def _decoder_kernel_fullk(x_ref, w_ref, b_ref, o_ref):
    """Single K step: relu(x @ w + b) fused straight into the output tile."""
    y = jnp.dot(x_ref[...], w_ref[...], preferred_element_type=jnp.float32)
    y = y + b_ref[...]                       # (1, tn) broadcasts over rows
    o_ref[...] = jnp.maximum(y, 0.0).astype(o_ref.dtype)


def _decoder_kernel_ktiled(x_ref, w_ref, b_ref, o_ref, acc_ref):
    """K tiled (last grid axis, 'arbitrary'): f32 VMEM accumulator + epilogue."""
    k = pl.program_id(2)

    @pl.when(k == 0)
    def _():
        acc_ref[...] = jnp.zeros_like(acc_ref)

    acc_ref[...] += jnp.dot(
        x_ref[...], w_ref[...], preferred_element_type=jnp.float32
    )

    @pl.when(k == pl.num_programs(2) - 1)
    def _():
        y = acc_ref[...] + b_ref[...]
        o_ref[...] = jnp.maximum(y, 0.0).astype(o_ref.dtype)


# ---------------------------------------------------------------------------
# Wrapper
# ---------------------------------------------------------------------------
def decoder_forward(x, w, b, *, input_dtype=None):
    """relu(x @ w + b) via a tiled Pallas TPU kernel.

    x: (..., E), w: (E, N), b: (N,). Returns (..., N) in x.dtype.
    `input_dtype`: None = auto (bf16 operands for non-toy shapes, exact f32 for
    small problems); pass jnp.float32 / jnp.bfloat16 to force.
    """
    orig_shape = x.shape
    E = orig_shape[-1]
    x2 = x.reshape(-1, E)
    B = x2.shape[0]
    E2, N = w.shape
    assert E == E2 and b.shape == (N,)
    out_dtype = x.dtype

    # ---- operand dtype: bf16 on the MXU for anything beyond toy shapes ----
    if input_dtype is None:
        big = (B * E * N) >= (1 << 22)        # ~128 x 128 x 256 and up
        input_dtype = jnp.bfloat16 if big else x2.dtype
    x2 = x2.astype(input_dtype)
    wk = w.astype(input_dtype)
    itemsize = jnp.dtype(input_dtype).itemsize
    sub = 8 if itemsize >= 4 else 16          # sublane multiple for the operands
    is_bf16 = itemsize < 4

    # ---- per-chip budgets ----
    vmem_cap = _vmem_capacity_bytes()
    big_vmem = vmem_cap >= 100 * 1024 * 1024  # v5e / v6e (128 MiB) vs v7x (64 MiB)
    vmem_limit = (96 if big_vmem else 48) * 1024 * 1024
    tm_cap = 1024 if big_vmem else 512
    tn_cap = 512 if big_vmem else 256
    full_k_max = 4096 if is_bf16 else 2048    # bf16 halves the per-tile bytes

    # ---- N (lane) tiling: keep stores lane-dense, feed the 256-wide MXU ----
    if N <= 128:
        N_pad, tn = 128, 128
    else:
        N_pad = _round_up(N, 256)
        tn = tn_cap if (tn_cap > 256 and N_pad % tn_cap == 0) else 256

    # ---- K (reduction) tiling: prefer a single full-K step ----
    if E <= full_k_max:
        tk, E_pad = E, E                      # block == full dim -> no padding needed
        k_tiled = False
    else:
        tk = 1024 if is_bf16 else 512
        E_pad = _round_up(E, tk)
        k_tiled = True

    # ---- batch tiling: balanced tiles, padding bounded by < sub rows/tile ----
    n_bt = max(1, pl.cdiv(B, tm_cap))
    tm = _round_up(pl.cdiv(B, n_bt), sub)
    # Split the batch only if the parallel grid would otherwise have < 2 steps
    # (gives v7x's second TensorCore work; otherwise it's pure overhead).
    if n_bt * (N_pad // tn) < 2 and B >= 4 * sub:
        n_bt = 2
        tm = _round_up(pl.cdiv(B, 2), sub)
    B_pad = n_bt * tm

    # ---- zero-pad operands to the tiled shapes (zeros don't change the math) ----
    if (B_pad, E_pad) != (B, E):
        x2 = jnp.pad(x2, ((0, B_pad - B), (0, E_pad - E)))
    if (E_pad, N_pad) != (E, N):
        wk = jnp.pad(wk, ((0, E_pad - E), (0, N_pad - N)))
    b2 = b.astype(jnp.float32).reshape(1, N)
    if N_pad != N:
        b2 = jnp.pad(b2, ((0, 0), (0, N_pad - N)))

    out_isz = jnp.dtype(out_dtype).itemsize
    cost = pl.CostEstimate(
        flops=2 * B_pad * E_pad * N_pad,
        transcendentals=0,
        bytes_accessed=(
            B_pad * E_pad * itemsize * (N_pad // tn)      # x re-reads per out col-tile
            + E_pad * N_pad * itemsize * (B_pad // tm)    # w re-reads per out row-tile
            + N_pad * 4
            + B_pad * N_pad * out_isz
        ),
    )

    if not k_tiled:
        grid = (B_pad // tm, N_pad // tn)
        grid_spec = pltpu.PrefetchScalarGridSpec(
            num_scalar_prefetch=0,
            grid=grid,
            in_specs=[
                pl.BlockSpec((tm, tk), lambda i, j: (i, 0)),   # x tile (full K)
                pl.BlockSpec((tk, tn), lambda i, j: (0, j)),   # weight tile
                pl.BlockSpec((1, tn), lambda i, j: (0, j)),    # bias tile
            ],
            out_specs=pl.BlockSpec((tm, tn), lambda i, j: (i, j)),
        )
        kernel = _decoder_kernel_fullk
        semantics = ("parallel", "parallel")
    else:
        grid = (B_pad // tm, N_pad // tn, E_pad // tk)
        grid_spec = pltpu.PrefetchScalarGridSpec(
            num_scalar_prefetch=0,
            grid=grid,
            in_specs=[
                pl.BlockSpec((tm, tk), lambda i, j, k: (i, k)),  # x tile
                pl.BlockSpec((tk, tn), lambda i, j, k: (k, j)),  # weight tile
                pl.BlockSpec((1, tn), lambda i, j, k: (0, j)),   # bias tile
            ],
            out_specs=pl.BlockSpec((tm, tn), lambda i, j, k: (i, j)),
            scratch_shapes=[pltpu.VMEM((tm, tn), jnp.float32)],  # f32 accumulator
        )
        kernel = _decoder_kernel_ktiled
        semantics = ("parallel", "parallel", "arbitrary")

    out = pl.pallas_call(
        kernel,
        out_shape=jax.ShapeDtypeStruct((B_pad, N_pad), out_dtype),
        grid_spec=grid_spec,
        compiler_params=pltpu.CompilerParams(
            dimension_semantics=semantics,
            vmem_limit_bytes=vmem_limit,
        ),
        cost_estimate=cost,
    )(x2, wk, b2)

    if (B_pad, N_pad) != (B, N):
        out = out[:B, :N]
    return out.reshape(orig_shape[:-1] + (N,))


def decoder_reference(x, w, b):
    return jnp.maximum(x @ w + b[None, :], 0.0)


if __name__ == "__main__":
    # Deterministic synthetic parameters / input (small shapes from the module).
    encoding_dim = 32
    output_dim = 64
    batch = 8

    key = jax.random.PRNGKey(0)
    kx, kw, kb = jax.random.split(key, 3)

    x = jax.random.normal(kx, (batch, encoding_dim), dtype=jnp.float32)
    # PyTorch nn.Linear stores weight as (out, in); kernel uses (in, out) = W.T.
    w = jax.random.normal(kw, (encoding_dim, output_dim), dtype=jnp.float32) * 0.1
    b = jax.random.normal(kb, (output_dim,), dtype=jnp.float32) * 0.1

    fwd = jax.jit(functools.partial(decoder_forward))
    out = jax.block_until_ready(fwd(x, w, b))

    ref = decoder_reference(x, w, b)
    assert out.shape == (batch, output_dim)
    assert jnp.allclose(out, ref, atol=1e-5, rtol=1e-5), "mismatch vs reference"

    print("KERNEL_OK")
</pallas_src>

<mosaic_0001>
module attributes {stable_mosaic.version = 11 : i64} {
  func.func @_decoder_kernel_fullk(%arg0: i32, %arg1: i32, %arg2: memref<8x32xf32, #tpu.memory_space<vmem>>, %arg3: memref<32x128xf32, #tpu.memory_space<vmem>>, %arg4: memref<1x128xf32, #tpu.memory_space<vmem>>, %arg5: memref<8x128xf32, #tpu.memory_space<vmem>>) attributes {dimension_semantics = [#tpu.dimension_semantics<parallel>, #tpu.dimension_semantics<parallel>], iteration_bounds = array<i64: 1, 1>, scalar_prefetch = 0 : i64, scratch_operands = 0 : i64, tpu.core_type = #tpu.core_type<tc>, window_params = [{transform_indices = @transform_0, window_bounds = array<i64: 8, 32>}, {transform_indices = @transform_1, window_bounds = array<i64: 32, 128>}, {transform_indices = @transform_2, window_bounds = array<i64: 1, 128>}, {transform_indices = @transform_3, window_bounds = array<i64: 8, 128>}]} {
    %c0 = arith.constant 0 : index
    %c0_0 = arith.constant 0 : index
    %0 = vector.load %arg2[%c0, %c0_0] : memref<8x32xf32, #tpu.memory_space<vmem>>, vector<8x32xf32>
    %c0_1 = arith.constant 0 : index
    %c0_2 = arith.constant 0 : index
    %1 = vector.load %arg3[%c0_1, %c0_2] : memref<32x128xf32, #tpu.memory_space<vmem>>, vector<32x128xf32>
    %cst = arith.constant dense<0.000000e+00> : vector<8x128xf32>
    %2 = tpu.matmul %0, %1, %cst {dimension_numbers = #tpu.dot_dimension_numbers<[1], [0], [0], [1], [0, 0, 1, 1], [], []>} : vector<8x32xf32>, vector<32x128xf32>, vector<8x128xf32> -> vector<8x128xf32>
    %c0_3 = arith.constant 0 : index
    %c0_4 = arith.constant 0 : index
    %3 = vector.load %arg4[%c0_3, %c0_4] : memref<1x128xf32, #tpu.memory_space<vmem>>, vector<1x128xf32>
    %4 = vector.broadcast %3 : vector<1x128xf32> to vector<8x128xf32>
    %5 = arith.addf %2, %4 : vector<8x128xf32>
    %cst_5 = arith.constant 0.000000e+00 : f32
    %6 = vector.broadcast %cst_5 : f32 to vector<8x128xf32>
    %7 = arith.maximumf %5, %6 : vector<8x128xf32>
    %c0_6 = arith.constant 0 : index
    %c0_7 = arith.constant 0 : index
    %8 = vector.load %arg5[%c0_6, %c0_7] : memref<8x128xf32, #tpu.memory_space<vmem>>, vector<8x128xf32>
    tpu.vector_store %arg5[%c0_6, %c0_7], %7 {strides = array<i32>} : memref<8x128xf32, #tpu.memory_space<vmem>>, vector<8x128xf32>,
    return
  }
  func.func @transform_0(%arg0: i32, %arg1: i32) -> (i32, i32) {
    %c0_i32 = arith.constant 0 : i32
    %c0_i32_0 = arith.constant 0 : i32
    return %arg0, %c0_i32 : i32, i32
  }
  func.func @transform_1(%arg0: i32, %arg1: i32) -> (i32, i32) {
    %c0_i32 = arith.constant 0 : i32
    %c0_i32_0 = arith.constant 0 : i32
    return %c0_i32, %arg1 : i32, i32
  }
  func.func @transform_2(%arg0: i32, %arg1: i32) -> (i32, i32) {
    %c0_i32 = arith.constant 0 : i32
    %c0_i32_0 = arith.constant 0 : i32
    return %c0_i32, %arg1 : i32, i32
  }
  func.func @transform_3(%arg0: i32, %arg1: i32) -> (i32, i32) {
    %c0_i32 = arith.constant 0 : i32
    return %arg0, %arg1 : i32, i32
  }
}

</mosaic_0001>

<llo_original>
// kernel: decoder_forward.1
$region0: #{decoder_forward.1}
  #allocation0 [shape = 'u32[]', space=smem, size = 0x4, offset = 0x4, fixed_abs, tag = 'smem constant byte address 0x4 - core index']
  #allocation1 [shape = 'u32[144,128]{1,0:T(1,128)}', space=vmem, size = 0x12000, scoped, tag = 'internal scratch']
  %s0 = inlined_call_operand.vmem [shape: f32[8,32], index: 0, kind: input, shape index: {}]
  %s1 = inlined_call_operand.vmem [shape: f32[32,128], index: 1, kind: input, shape index: {}]
  %s2 = inlined_call_operand.vmem [shape: f32[1,128], index: 2, kind: input, shape index: {}]
  %s3 = inlined_call_operand.hbm [shape: f32[8,128], index: 3, kind: output, shape index: {}]
  %s4 = sld [smem:[#allocation0]]
  $region22: #{decoder_forward.1} parent=0
    _
  %s6 = ssub.s32 1, %s4
  %s7 = scalar_select 0, %s6, %s4
  $region1: #{decoder_forward.1} parent=0
    #allocation2 [shape = 'u8[4096]{0}', space=vmem, size = 0x1000, scoped, tag = 'output window, operand 0, single buffered']
    #allocation3 [shape = 's32[1]{0}', space=sflag, size = 0x4, scoped, tag = 'scoped memory for decoder_forward.1']
    %8 = vsyncpa [#allocation3], 0
    // Predicated region
    $region2: #{decoder_forward.1} parent=1 // pred_check
      _
    $region3: #{decoder_forward.1} parent=1 // pred_check_branch
      %10 = sbr.rel (0) target = $region5
    $region4: #{decoder_forward.1} parent=1 // pred_region
      _
    $region5: #{decoder_forward.1} parent=1 // pred_fallthru
      _
    // Predicated region
    $region6: #{decoder_forward.1} parent=1 // pred_check
      _
    $region7: #{decoder_forward.1} parent=1 // pred_check_branch
      %12 = sbr.rel (0) target = $region9
    $region8: #{decoder_forward.1} parent=1 // pred_region
      _
    $region9: #{decoder_forward.1} parent=1 // pred_fallthru
      _
    // Predicated region
    $region10: #{decoder_forward.1} parent=1 // pred_check
      _
    $region11: #{decoder_forward.1} parent=1 // pred_check_branch
      %14 = sbr.rel (0) target = $region13
    $region12: #{decoder_forward.1} parent=1 // pred_region
      _
    $region13: #{decoder_forward.1} parent=1 // pred_fallthru
      _
    %v15 = vld [vmem:[%s0] sm:$0xff]
    %v16 = vld [vmem:[%s1] sm:$0xff]
    %v17 = vld [vmem:[%s1 + $0x8] sm:$0xff]
    %v18 = vld [vmem:[%s1 + $0x10] sm:$0xff]
    %v19 = vld [vmem:[%s1 + $0x18] sm:$0xff]
    %v20 = vld [vmem:[%s2] sm:$0x1]
    %v22 = vlaneseq
    %v23 = vshrl.u32 %v22, 7
    %v24 = vsub.s32 0, %v23
    %v25 = vrot.slane %v20, %v24
    %vm27 = vcmask 261120
    %v29 = vsel %vm27, %v15, 0
    %31 = vmatprep.subr.mxu0 0.0
    %32 = vmatpush1.msra.mxu0 %v16
    %33 = vmatprep.subr.mxu0 0.0
    %34 = vmatpush1.msra.mxu0 %v17
    %35 = vmatprep.subr.mxu0 0.0
    %36 = vmatpush1.msra.mxu0 %v18
    %37 = vmatprep.subr.mxu0 0.0
    %38 = vmatpush1.msra.mxu0 %v19
    %39 = vmatprep.subr.mxu0 0.0
    %40 = vmatpush1.msra.mxu0 0.0
    %41 = vmatprep.subr.mxu0 0.0
    %42 = vmatpush1.msra.mxu0 0.0
    %43 = vmatprep.subr.mxu0 0.0
    %44 = vmatpush1.msra.mxu0 0.0
    %45 = vmatprep.subr.mxu0 0.0
    %46 = vmatpush1.msra.mxu0 0.0
    %47 = vmatprep.subr.mxu0 0.0
    %48 = vmatpush1.msra.mxu0 0.0
    %49 = vmatprep.subr.mxu0 0.0
    %50 = vmatpush1.msra.mxu0 0.0
    %51 = vmatprep.subr.mxu0 0.0
    %52 = vmatpush1.msra.mxu0 0.0
    %53 = vmatprep.subr.mxu0 0.0
    %54 = vmatpush1.msra.mxu0 0.0
    %55 = vmatprep.subr.mxu0 0.0
    %56 = vmatpush1.msra.mxu0 0.0
    %57 = vmatprep.subr.mxu0 0.0
    %58 = vmatpush1.msra.mxu0 0.0
    %59 = vmatprep.subr.mxu0 0.0
    %60 = vmatpush1.msra.mxu0 0.0
    %61 = vmatprep.subr.mxu0 0.0
    %62 = vmatpush1.msra.mxu0 0.0
    %63 = vmatprep.subr.mxu0 0.0
    %64 = vmatpush1.msra.mxu0 0.0
    %65 = vmatprep.subr.mxu0 0.0
    %66 = vmatpush1.msra.mxu0 0.0
    %67 = vmatprep.subr.mxu0 0.0
    %68 = vmatpush1.msra.mxu0 0.0
    %69 = vmatprep.subr.mxu0 0.0
    %70 = vmatpush1.msra.mxu0 0.0
    %71 = vmatprep.subr.mxu0 0.0
    %72 = vmatpush1.msra.mxu0 0.0
    %73 = vmatprep.subr.mxu0 0.0
    %74 = vmatpush1.msra.mxu0 0.0
    %75 = vmatprep.subr.mxu0 0.0
    %76 = vmatpush1.msra.mxu0 0.0
    %77 = vmatprep.subr.mxu0 0.0
    %78 = vmatpush1.msra.mxu0 0.0
    %79 = vmatprep.subr.mxu0 0.0
    %80 = vmatpush1.msra.mxu0 0.0
    %81 = vmatprep.subr.mxu0 0.0
    %82 = vmatpush1.msra.mxu0 0.0
    %83 = vmatprep.subr.mxu0 0.0
    %84 = vmatpush1.msra.mxu0 0.0
    %85 = vmatprep.subr.mxu0 0.0
    %86 = vmatpush1.msra.mxu0 0.0
    %87 = vmatprep.subr.mxu0 0.0
    %88 = vmatpush1.msra.mxu0 0.0
    %89 = vmatprep.subr.mxu0 0.0
    %90 = vmatpush1.msra.mxu0 0.0
    %91 = vmatprep.subr.mxu0 0.0
    %92 = vmatpush1.msra.mxu0 0.0
    %93 = vmatprep.subr.mxu0 0.0
    %94 = vmatpush1.msra.mxu0 0.0
    %95 = vmatprep.mubr.f32.mxu0 0.0
    %96 = vmatmul.mubr.f32.gmra.mrb[0].mxu0 %v29
    %v97 = vpop.f32.mrb[0].mxu0
    %v98 = vadd.f32 %v25, %v97
    %v99 = vpop.f32.mrb[0].mxu0
    %100 = vdwg.mxu0
    %v101 = vmax.f32 %v98, 0.0
    %102 = vst [vmem:[#allocation2] sm:$0xff] %v101
    // Predicated region
    $region14: #{decoder_forward.1} parent=1 // pred_check
      _
    $region15: #{decoder_forward.1} parent=1 // pred_check_branch
      %104 = sbr.rel (0) target = $region17
    $region16: #{decoder_forward.1} parent=1 // pred_region
      %s106 = ssub.s32 128, 128
      %107 = vsyncadd [#allocation3], %s106
      %s109 = sshll.u32 [#allocation2], 4
      %s110 = int_to_ptr.vmem [resolvable:$true] %s109
      %112 = dma.vmem_to_hbm [thread:$0]  %s110, 128, %s3, [#allocation3]
    $region17: #{decoder_forward.1} parent=1 // pred_fallthru
      _
    // Predicated region
    $region18: #{decoder_forward.1} parent=1 // pred_check
      _
    $region19: #{decoder_forward.1} parent=1 // pred_check_branch
      %114 = sbr.rel (0) target = $region21
    $region20: #{decoder_forward.1} parent=1 // pred_region
      %115 = dma.done [#allocation3], 128
    $region21: #{decoder_forward.1} parent=1 // pred_fallthru
      _
    %116 = vsyncpa [#allocation3], 1

</llo_original>
